<compile_context>
chip_gen: v6e
topology: v6e:2x2x1
jax: 0.10.0
libtpu: 0.0.40
codegen_flags: <defaults>
</compile_context>

<pallas_src>
import functools

import jax
import jax.numpy as jnp
from jax.experimental import pallas as pl
from jax.experimental.pallas import tpu as pltpu


def _round_up(x, m):
    return ((x + m - 1) // m) * m


def _kl_top1_kernel(out_ref, lab_ref, row_ref, *, lambd):
    """One grid step: (tb, N) rows -> (tb, 1) per-row partial loss sums."""
    o = out_ref[...].astype(jnp.float32)
    l = lab_ref[...].astype(jnp.float32)

    # Numerically stable softmax / log_softmax of `out` over the class axis.
    o_max = jnp.max(o, axis=-1, keepdims=True)
    o_sh = o - o_max
    o_exp = jnp.exp(o_sh)
    o_sum = jnp.sum(o_exp, axis=-1, keepdims=True)
    log_p = o_sh - jnp.log(o_sum)            # log_softmax(out)

    # log_softmax of `labels`.
    l_max = jnp.max(l, axis=-1, keepdims=True)
    l_sh = l - l_max
    log_q = l_sh - jnp.log(jnp.sum(jnp.exp(l_sh), axis=-1, keepdims=True))

    # softmax(out) * (log_p*(1+lambd) - log_q)
    #   = (o_exp / o_sum) * (...)  -- factor the per-row 1/o_sum out of the
    # per-element multiply: reduce first, scale the row sums once.
    term = o_exp * (log_p * (1.0 + lambd) - log_q)
    row = jnp.sum(term, axis=-1, keepdims=True) * pl.reciprocal(o_sum)
    row_ref[...] = row


def weighted_kl_top1_loss(out, labels, lambd=0.0, *, tb=None):
    """Pallas TPU implementation of WeightedKLDivergenceTopOneCriterion.forward."""
    assert out.shape == labels.shape and out.ndim == 2
    B, N = out.shape

    # Tile selection: target ~4 MiB per f32 input block so that
    # 2 inputs x 2 pipeline buffers x block stays well inside the scoped VMEM
    # budget on every generation (v7x: 64 MiB physical / 32 MiB scoped default).
    if tb is None:
        bytes_per_row = N * 4
        tb = (4 * 1024 * 1024) // max(bytes_per_row, 1)
        tb = max(8, min(1024, (tb // 8) * 8))
    tb = max(8, (tb // 8) * 8)            # f32 sublane packing: multiple of 8
    tb = min(tb, _round_up(B, 8))         # don't exceed the (padded) batch

    # Pad the batch so it divides evenly into row tiles.  Padded rows produce
    # finite garbage (softmax of zeros) and are sliced away before the final
    # reduction, so no in-kernel masking is needed.
    B_pad = _round_up(B, tb)
    if B_pad != B:
        pad = B_pad - B
        out = jnp.pad(out, ((0, pad), (0, 0)))
        labels = jnp.pad(labels, ((0, pad), (0, 0)))

    # TODO(synk): for very large class counts (N >= ~32k) tile the class axis
    # with an online-softmax formulation instead of full-N row blocks.

    kernel = functools.partial(_kl_top1_kernel, lambd=float(lambd))

    partials = pl.pallas_call(
        kernel,
        out_shape=jax.ShapeDtypeStruct((B_pad, 1), jnp.float32),
        grid_spec=pltpu.PrefetchScalarGridSpec(
            num_scalar_prefetch=0,
            grid=(B_pad // tb,),
            in_specs=[
                pl.BlockSpec((tb, N), lambda i: (i, 0)),
                pl.BlockSpec((tb, N), lambda i: (i, 0)),
            ],
            out_specs=pl.BlockSpec((tb, 1), lambda i: (i, 0)),
        ),
        compiler_params=pltpu.CompilerParams(
            # No cross-step dependency -> fully parallel grid (v7x: 2 TCs).
            dimension_semantics=("parallel",),
            vmem_limit_bytes=32 * 1024 * 1024,
        ),
    )(out, labels)

    return jnp.sum(partials[:B, 0])


def _reference(out, labels, lambd=0.0):
    log_p = jax.nn.log_softmax(out, axis=1)
    p = jax.nn.softmax(out, axis=1)
    log_q = jax.nn.log_softmax(labels, axis=1)
    return jnp.sum(jnp.sum(p * (log_p * (1.0 + lambd) - log_q), axis=1))


if __name__ == "__main__":
    key = jax.random.PRNGKey(0)
    k1, k2 = jax.random.split(key)
    B, N = 16, 128
    lambd = 0.3  # deterministic hyperparameter choice for this synthetic test

    out = jax.random.normal(k1, (B, N), dtype=jnp.float32)
    labels = jax.random.normal(k2, (B, N), dtype=jnp.float32)

    loss = weighted_kl_top1_loss(out, labels, lambd=lambd)
    loss = jax.block_until_ready(loss)

    ref = _reference(out, labels, lambd=lambd)
    assert jnp.allclose(loss, ref, rtol=1e-5, atol=1e-5), (loss, ref)
    print("KERNEL_OK")
</pallas_src>

<mosaic_0001>
module attributes {stable_mosaic.version = 11 : i64} {
  func.func @_kl_top1_kernel(%arg0: i32, %arg1: memref<16x128xf32, #tpu.memory_space<vmem>>, %arg2: memref<16x128xf32, #tpu.memory_space<vmem>>, %arg3: memref<16x1xf32, #tpu.memory_space<vmem>>) attributes {dimension_semantics = [#tpu.dimension_semantics<parallel>], iteration_bounds = array<i64: 1>, scalar_prefetch = 0 : i64, scratch_operands = 0 : i64, tpu.core_type = #tpu.core_type<tc>, window_params = [{transform_indices = @transform_0, window_bounds = array<i64: 16, 128>}, {transform_indices = @transform_1, window_bounds = array<i64: 16, 128>}, {transform_indices = @transform_2, window_bounds = array<i64: 16, 1>}]} {
    %c0 = arith.constant 0 : index
    %c0_0 = arith.constant 0 : index
    %0 = vector.load %arg1[%c0, %c0_0] : memref<16x128xf32, #tpu.memory_space<vmem>>, vector<16x128xf32>
    %c0_1 = arith.constant 0 : index
    %c0_2 = arith.constant 0 : index
    %1 = vector.load %arg2[%c0_1, %c0_2] : memref<16x128xf32, #tpu.memory_space<vmem>>, vector<16x128xf32>
    %cst = arith.constant dense<0xFF800000> : vector<16xf32>
    %2 = vector.multi_reduction <maximumf>, %0, %cst [1] : vector<16x128xf32> to vector<16xf32>
    %3 = vector.shape_cast %2 : vector<16xf32> to vector<16x1xf32>
    %4 = vector.broadcast %3 : vector<16x1xf32> to vector<16x128xf32>
    %5 = arith.subf %0, %4 : vector<16x128xf32>
    %6 = math.exp %5 : vector<16x128xf32>
    %cst_3 = arith.constant dense<0.000000e+00> : vector<16xf32>
    %7 = vector.multi_reduction <add>, %6, %cst_3 [1] : vector<16x128xf32> to vector<16xf32>
    %8 = vector.shape_cast %7 : vector<16xf32> to vector<16x1xf32>
    %9 = math.log %8 : vector<16x1xf32>
    %10 = vector.broadcast %9 : vector<16x1xf32> to vector<16x128xf32>
    %11 = arith.subf %5, %10 : vector<16x128xf32>
    %cst_4 = arith.constant dense<0xFF800000> : vector<16xf32>
    %12 = vector.multi_reduction <maximumf>, %1, %cst_4 [1] : vector<16x128xf32> to vector<16xf32>
    %13 = vector.shape_cast %12 : vector<16xf32> to vector<16x1xf32>
    %14 = vector.broadcast %13 : vector<16x1xf32> to vector<16x128xf32>
    %15 = arith.subf %1, %14 : vector<16x128xf32>
    %16 = math.exp %15 : vector<16x128xf32>
    %cst_5 = arith.constant dense<0.000000e+00> : vector<16xf32>
    %17 = vector.multi_reduction <add>, %16, %cst_5 [1] : vector<16x128xf32> to vector<16xf32>
    %18 = vector.shape_cast %17 : vector<16xf32> to vector<16x1xf32>
    %19 = math.log %18 : vector<16x1xf32>
    %20 = vector.broadcast %19 : vector<16x1xf32> to vector<16x128xf32>
    %21 = arith.subf %15, %20 : vector<16x128xf32>
    %cst_6 = arith.constant 1.300000e+00 : f32
    %22 = vector.broadcast %cst_6 : f32 to vector<16x128xf32>
    %23 = arith.mulf %11, %22 : vector<16x128xf32>
    %24 = arith.subf %23, %21 : vector<16x128xf32>
    %25 = arith.mulf %6, %24 : vector<16x128xf32>
    %cst_7 = arith.constant dense<0.000000e+00> : vector<16xf32>
    %26 = vector.multi_reduction <add>, %25, %cst_7 [1] : vector<16x128xf32> to vector<16xf32>
    %27 = vector.shape_cast %26 : vector<16xf32> to vector<16x1xf32>
    %28 = tpu.reciprocal %8 : vector<16x1xf32> -> vector<16x1xf32>
    %29 = arith.mulf %27, %28 : vector<16x1xf32>
    %c0_8 = arith.constant 0 : index
    %c0_9 = arith.constant 0 : index
    %30 = vector.load %arg3[%c0_8, %c0_9] : memref<16x1xf32, #tpu.memory_space<vmem>>, vector<16x1xf32>
    tpu.vector_store %arg3[%c0_8, %c0_9], %29 {strides = array<i32>} : memref<16x1xf32, #tpu.memory_space<vmem>>, vector<16x1xf32>,
    return
  }
  func.func @transform_0(%arg0: i32) -> (i32, i32) {
    %c0_i32 = arith.constant 0 : i32
    %c0_i32_0 = arith.constant 0 : i32
    return %arg0, %c0_i32 : i32, i32
  }
  func.func @transform_1(%arg0: i32) -> (i32, i32) {
    %c0_i32 = arith.constant 0 : i32
    %c0_i32_0 = arith.constant 0 : i32
    return %arg0, %c0_i32 : i32, i32
  }
  func.func @transform_2(%arg0: i32) -> (i32, i32) {
    %c0_i32 = arith.constant 0 : i32
    %c0_i32_0 = arith.constant 0 : i32
    return %arg0, %c0_i32 : i32, i32
  }
}

</mosaic_0001>

<llo_original>
// kernel: tpu_custom_call.1
$region0: #{tpu_custom_call.1}
  #allocation0 [shape = 'u32[]', space=smem, size = 0x4, offset = 0x4, fixed_abs, tag = 'smem constant byte address 0x4 - core index']
  #allocation1 [shape = 'u32[144,128]{1,0:T(1,128)}', space=vmem, size = 0x12000, scoped, tag = 'internal scratch']
  %s0 = inlined_call_operand.hbm [shape: f32[16,128], index: 0, kind: input, shape index: {}]
  %s1 = inlined_call_operand.hbm [shape: f32[16,128], index: 1, kind: input, shape index: {}]
  %s2 = inlined_call_operand.vmem [shape: f32[16,1], index: 2, kind: output, shape index: {}]
  %s3 = sld [smem:[#allocation0]]
  $region26: #{tpu_custom_call.1} parent=0
    _
  %s5 = ssub.s32 1, %s3
  %s6 = scalar_select 0, %s5, %s3
  $region1: #{tpu_custom_call.1} parent=0
    #allocation2 [shape = 'u8[8192]{0}', space=vmem, size = 0x2000, scoped, tag = 'input window, operand 0, single buffered']
    #allocation3 [shape = 's32[1]{0}', space=sflag, size = 0x4, scoped, tag = 'scoped memory for tpu_custom_call.1']
    #allocation4 [shape = 'u8[8192]{0}', space=vmem, size = 0x2000, scoped, tag = 'input window, operand 1, single buffered']
    #allocation5 [shape = 's32[1]{0}', space=sflag, size = 0x4, scoped, tag = 'scoped memory for tpu_custom_call.1']
    %7 = vsyncpa [#allocation3], 0
    %8 = vsyncpa [#allocation5], 0
    // Predicated region
    $region2: #{tpu_custom_call.1} parent=1 // pred_check
      _
    $region3: #{tpu_custom_call.1} parent=1 // pred_check_branch
      %10 = sbr.rel (0) target = $region5
    $region4: #{tpu_custom_call.1} parent=1 // pred_region
      %s12 = ssub.s32 256, 256
      %13 = vsyncadd [#allocation3], %s12
      %s14 = sshll.u32 [#allocation2], 4
      %s15 = int_to_ptr.vmem [resolvable:$true] %s14
      %20 = dma.hbm_to_vmem [thread:$0]  %s0, 256, %s15, [#allocation3], 128, 128, 8
    $region5: #{tpu_custom_call.1} parent=1 // pred_fallthru
      _
    // Predicated region
    $region6: #{tpu_custom_call.1} parent=1 // pred_check
      _
    $region7: #{tpu_custom_call.1} parent=1 // pred_check_branch
      %22 = sbr.rel (0) target = $region9
    $region8: #{tpu_custom_call.1} parent=1 // pred_region
      %s24 = ssub.s32 256, 256
      %25 = vsyncadd [#allocation5], %s24
      %s26 = sshll.u32 [#allocation4], 4
      %s27 = int_to_ptr.vmem [resolvable:$true] %s26
      %32 = dma.hbm_to_vmem [thread:$0]  %s1, 256, %s27, [#allocation5], 128, 128, 8
    $region9: #{tpu_custom_call.1} parent=1 // pred_fallthru
      _
    // Predicated region
    $region10: #{tpu_custom_call.1} parent=1 // pred_check
      _
    $region11: #{tpu_custom_call.1} parent=1 // pred_check_branch
      %34 = sbr.rel (0) target = $region13
    $region12: #{tpu_custom_call.1} parent=1 // pred_region
      %35 = dma.done [#allocation3], 256
    $region13: #{tpu_custom_call.1} parent=1 // pred_fallthru
      _
    // Predicated region
    $region14: #{tpu_custom_call.1} parent=1 // pred_check
      _
    $region15: #{tpu_custom_call.1} parent=1 // pred_check_branch
      %37 = sbr.rel (0) target = $region17
    $region16: #{tpu_custom_call.1} parent=1 // pred_region
      %38 = dma.done [#allocation5], 256
    $region17: #{tpu_custom_call.1} parent=1 // pred_fallthru
      _
    %v39 = vld [vmem:[#allocation2] sm:$0xff]
    %v40 = vld [vmem:[#allocation2 + $0x8] sm:$0xff]
    %v41 = vld [vmem:[#allocation4] sm:$0xff]
    %v42 = vld [vmem:[#allocation4 + $0x8] sm:$0xff]
    %43 = vmax.xlane.f32.xlu0 %v39
    %v44 = vpop.xlane.xlu0 %43
    %45 = vmax.xlane.f32.xlu0 %v40
    %v46 = vpop.xlane.xlu0 %45
    %v47 = vsub.f32 %v39, %v44
    %v48 = vsub.f32 %v40, %v46
    %v49 = vmul.f32 %v47, 1.442695
    %v50 = vpow.pop %v49
    %v51 = vmul.f32 %v48, 1.442695
    %v52 = vpow.pop %v51
    %53 = vadd.xlane.f32.xlu0 %v50
    %v54 = vpop.xlane.xlu0 %53
    %55 = vadd.xlane.f32.xlu0 %v52
    %v56 = vpop.xlane.xlu0 %55
    %v57 = vlog2.pop %v54
    %v58 = vmul.f32 %v57, 0.6931472
    %v59 = vlog2.pop %v56
    %v60 = vmul.f32 %v59, 0.6931472
    %v61 = vsub.f32 %v47, %v58
    %v62 = vsub.f32 %v48, %v60
    %63 = vmax.xlane.f32.xlu0 %v41
    %v64 = vpop.xlane.xlu0 %63
    %65 = vmax.xlane.f32.xlu0 %v42
    %v66 = vpop.xlane.xlu0 %65
    %v67 = vsub.f32 %v41, %v64
    %v68 = vsub.f32 %v42, %v66
    %v69 = vmul.f32 %v67, 1.442695
    %v70 = vpow.pop %v69
    %v71 = vmul.f32 %v68, 1.442695
    %v72 = vpow.pop %v71
    %73 = vadd.xlane.f32.xlu0 %v70
    %v74 = vpop.xlane.xlu0 %73
    %75 = vadd.xlane.f32.xlu0 %v72
    %v76 = vpop.xlane.xlu0 %75
    %v77 = vlog2.pop %v74
    %v78 = vmul.f32 %v77, 0.6931472
    %v79 = vlog2.pop %v76
    %v80 = vmul.f32 %v79, 0.6931472
    %v81 = vsub.f32 %v67, %v78
    %v82 = vsub.f32 %v68, %v80
    %v83 = vmul.f32 %v61, 1.3
    %v84 = vmul.f32 %v62, 1.3
    %v85 = vsub.f32 %v83, %v81
    %v86 = vsub.f32 %v84, %v82
    %v87 = vmul.f32 %v50, %v85
    %v88 = vmul.f32 %v52, %v86
    %89 = vadd.xlane.f32.xlu0 %v87
    %v90 = vpop.xlane.xlu0 %89
    %91 = vadd.xlane.f32.xlu0 %v88
    %v92 = vpop.xlane.xlu0 %91
    %v93 = vrcp.pop %v54
    %v94 = vrcp.pop %v56
    %v95 = vmul.f32 %v90, %v93
    %v96 = vmul.f32 %v92, %v94
    %vm97 = vcmask 7168
    %98 = vst.msk [vmem:[%s2] sm:$0xff] %vm97, %v95
    %99 = vst.msk [vmem:[%s2 + $0x8] sm:$0xff] %vm97, %v96
    // Predicated region
    $region18: #{tpu_custom_call.1} parent=1 // pred_check
      _
    $region19: #{tpu_custom_call.1} parent=1 // pred_check_branch
      %101 = sbr.rel (0) target = $region21
    $region20: #{tpu_custom_call.1} parent=1 // pred_region
      _
    $region21: #{tpu_custom_call.1} parent=1 // pred_fallthru
      _
    // Predicated region
    $region22: #{tpu_custom_call.1} parent=1 // pred_check
      _
    $region23: #{tpu_custom_call.1} parent=1 // pred_check_branch
      %103 = sbr.rel (0) target = $region25
    $region24: #{tpu_custom_call.1} parent=1 // pred_region
      _
    $region25: #{tpu_custom_call.1} parent=1 // pred_fallthru
      _
    %104 = vsyncpa [#allocation3], 1
    %105 = vsyncpa [#allocation5], 1

</llo_original>
